<compile_context>
chip_gen: v7x
topology: tpu7x:2x2x1
jax: 0.10.0
libtpu: 0.0.40
codegen_flags: <defaults>
</compile_context>

<pallas_src>
import jax
import jax.numpy as jnp
from jax.experimental import pallas as pl
from jax.experimental.pallas import tpu as pltpu

# ---- static problem configuration (small demo shapes, NCHW) -----------------
N, C_IN, H, W = 2, 4, 16, 16           # input  (N, C_IN, H, W)
C_OUT, KH, KW = 8, 2, 2                # Conv2d(4, 8, kernel_size=2, padding=1)
PAD = 1
HO = H + 2 * PAD - KH + 1              # 17
WO = W + 2 * PAD - KW + 1              # 17
NP = HO * WO                           # 289  flattened output spatial (lane axis)
LEFT = PAD * WO + PAD                  # 18   zero prologue of the extended buffer
EXT = LEFT + NP                        # 307  zero-extended, stride-WO input length
R = N * C_IN                           # 8    (image, in-channel) rows = 1 sublane tile
KK = KH * KW                           # 4    conv taps
SHIFTS = tuple(kh * WO + kw for kh in range(KH) for kw in range(KW))  # (0, 1, 17, 18)


def conv_add_kernel(x_ref, w_ref, b_ref, other_ref, out_ref, xe_ref, slab_ref):
    """Single invocation (grid=()), NCHW-native, one merged MXU dot.

    x_ref     : (R, H*W)          flattened unpadded input (R = N*C_IN)
    w_ref     : (N*C_OUT, KK*R)   block-diagonal-per-image weight matrix
    b_ref     : (N*C_OUT, 1)      bias (tiled over images)
    other_ref : (N*C_OUT, NP)     tensor added to the conv output
    out_ref   : (N*C_OUT, NP)     output (aliased with `other`)
    xe_ref    : (R, EXT)          zero-extended, stride-WO input  (VMEM scratch)
    slab_ref  : (KK*R, NP)        im2col slab, 4 shifted copies   (VMEM scratch)
    """
    # ---- fused zero padding: re-stride rows (W -> WO) into a zeroed buffer --
    # Only the LEFT prologue, the 1-lane inter-row gaps and the 18-lane tail
    # must stay zero; with the 8-sublane layout the full zero fill is only
    # 3 wide stores, cheaper than targeted per-gap stores.
    xe_ref[...] = jnp.zeros(xe_ref.shape, xe_ref.dtype)
    # x and xe share a dtype, so no per-row cast is emitted inside this loop
    # (if the input ever becomes bf16, cast once *before* the loop).
    for a in range(H):                                  # 16 static row placements
        dst = LEFT + a * WO
        xe_ref[:, dst:dst + W] = x_ref[:, a * W:(a + 1) * W]

    # ---- im2col slab: one shifted (R, NP) copy per tap ----------------------
    # Tap (kh, kw) is exactly the slice xe[:, s : s + NP] with s = kh*WO + kw;
    # all out-of-range / border reads provably land on zeroed lanes.
    for t in range(KK):
        s = SHIFTS[t]
        slab_ref[t * R:(t + 1) * R, :] = xe_ref[:, s:s + NP]

    # ---- single MXU matmul covering all taps and both images ----------------
    acc = jnp.dot(w_ref[...], slab_ref[...],
                  preferred_element_type=jnp.float32)   # (N*C_OUT, NP)

    # `other_ref` is aliased onto `out_ref` (input_output_aliases): the RHS is
    # fully materialised in vregs before the store, so this read-then-write on
    # the shared buffer is safe.  Keep it as a single statement.
    out_ref[...] = (acc + b_ref[...].astype(jnp.float32)
                    + other_ref[...].astype(jnp.float32)).astype(out_ref.dtype)


def prepare_params(weight, bias):
    """One-time (parameter-load-time) re-layout of the Conv2d parameters.

    weight : (C_OUT, C_IN, KH, KW) -> (N*C_OUT, KK*N*C_IN) block-diag per image
    bias   : (C_OUT,)              -> (N*C_OUT, 1)
    The packing bakes in the static batch size N (row n*C_OUT+o only sees the
    columns of image n), so one (16,32)@(32,289) dot computes both images at
    once with the result already in flattened-NCHW row order.
    """
    w_taps = jnp.transpose(weight, (2, 3, 0, 1)).reshape(KK, C_OUT, C_IN)
    eye = jnp.eye(N, dtype=weight.dtype)
    # W_big[n*C_OUT+o, t*(N*C_IN) + m*C_IN + c] = (n == m) * weight[o, c, kh, kw]
    w_big = jnp.einsum('nm,toc->notmc', eye, w_taps).reshape(N * C_OUT, KK * N * C_IN)
    b_big = jnp.tile(bias, (N,)).reshape(N * C_OUT, 1)
    return w_big, b_big


@jax.jit
def _forward(x1, other, w_big, b_big):
    # All reshapes below are contiguous NCHW reshapes (free).
    x_flat = x1.reshape(R, H * W)
    other_flat = other.reshape(N * C_OUT, NP)

    out_flat = pl.pallas_call(
        conv_add_kernel,
        out_shape=jax.ShapeDtypeStruct((N * C_OUT, NP), x1.dtype),
        in_specs=[
            pl.BlockSpec(memory_space=pltpu.MemorySpace.VMEM),   # x
            pl.BlockSpec(memory_space=pltpu.MemorySpace.VMEM),   # packed weight
            pl.BlockSpec(memory_space=pltpu.MemorySpace.VMEM),   # bias
            pl.BlockSpec(memory_space=pltpu.MemorySpace.VMEM),   # other (aliased)
        ],
        out_specs=pl.BlockSpec(memory_space=pltpu.MemorySpace.VMEM),
        scratch_shapes=[
            pltpu.VMEM((R, EXT), x1.dtype),                      # zero-extended input
            pltpu.VMEM((KK * R, NP), x1.dtype),                  # im2col slab
        ],
        input_output_aliases={3: 0},                             # `other` -> output
    )(x_flat, w_big, b_big, other_flat)

    return out_flat.reshape(N, C_OUT, HO, WO)        # free reshape back to NCHW


def model_forward(x1, other, w_big, b_big, padding1=None, padding2=None):
    """Replicates Model.forward: conv(x1) + other.

    padding1 / padding2 (including the torch.randn(v1.shape) default) never
    affect the returned value, so they are accepted and ignored.
    """
    del padding1, padding2
    return _forward(x1, other, w_big, b_big)


if __name__ == "__main__":
    key = jax.random.PRNGKey(0)
    k_x, k_o, k_w, k_b = jax.random.split(key, 4)

    # deterministic inputs
    x1 = jax.random.normal(k_x, (N, C_IN, H, W), dtype=jnp.float32)
    other = jax.random.normal(k_o, (N, C_OUT, HO, WO), dtype=jnp.float32)

    # deterministic Conv2d parameters (PyTorch-style uniform(-1/sqrt(fan_in), .))
    fan_in = C_IN * KH * KW
    bound = 1.0 / (fan_in ** 0.5)
    weight = jax.random.uniform(k_w, (C_OUT, C_IN, KH, KW),
                                minval=-bound, maxval=bound, dtype=jnp.float32)
    bias = jax.random.uniform(k_b, (C_OUT,),
                              minval=-bound, maxval=bound, dtype=jnp.float32)

    # one-time parameter re-layout (outside the per-call jit path)
    w_big, b_big = prepare_params(weight, bias)
    w_big, b_big = jax.block_until_ready((w_big, b_big))

    out = model_forward(x1, other, w_big, b_big, padding1=1, padding2=None)
    out = jax.block_until_ready(out)

    # reference check with XLA's conv (NCHW, same padding/stride semantics)
    ref = jax.lax.conv_general_dilated(
        x1, weight, window_strides=(1, 1), padding=((PAD, PAD), (PAD, PAD)),
        dimension_numbers=("NCHW", "OIHW", "NCHW")) + bias[None, :, None, None]
    ref = ref + other

    assert out.shape == (N, C_OUT, HO, WO)
    assert jnp.allclose(out, ref, atol=1e-5, rtol=1e-5)

    print("KERNEL_OK")
</pallas_src>

<mosaic_0001>
module attributes {stable_mosaic.version = 11 : i64} {
  func.func @conv_add_kernel(%arg0: memref<8x256xf32, #tpu.memory_space<vmem>>, %arg1: memref<16x32xf32, #tpu.memory_space<vmem>>, %arg2: memref<16x1xf32, #tpu.memory_space<vmem>>, %arg3: memref<16x289xf32, #tpu.memory_space<vmem>>, %arg4: memref<16x289xf32, #tpu.memory_space<vmem>>, %arg5: memref<8x307xf32, #tpu.memory_space<vmem>>, %arg6: memref<32x289xf32, #tpu.memory_space<vmem>>) attributes {dimension_semantics = [], scalar_prefetch = 0 : i64, scratch_operands = 2 : i64, tpu.core_type = #tpu.core_type<tc>} {
    %cst = arith.constant 0.000000e+00 : f32
    %0 = vector.broadcast %cst : f32 to vector<8x307xf32>
    %c0 = arith.constant 0 : index
    %c0_0 = arith.constant 0 : index
    %1 = vector.load %arg5[%c0, %c0_0] : memref<8x307xf32, #tpu.memory_space<vmem>>, vector<8x307xf32>
    tpu.vector_store %arg5[%c0, %c0_0], %0 {strides = array<i32>} : memref<8x307xf32, #tpu.memory_space<vmem>>, vector<8x307xf32>,
    %c0_1 = arith.constant 0 : index
    %c0_2 = arith.constant 0 : index
    %2 = vector.load %arg0[%c0_1, %c0_2] : memref<8x256xf32, #tpu.memory_space<vmem>>, vector<8x16xf32>
    %c0_3 = arith.constant 0 : index
    %c18 = arith.constant 18 : index
    %3 = vector.load %arg5[%c0_3, %c18] : memref<8x307xf32, #tpu.memory_space<vmem>>, vector<8x16xf32>
    tpu.vector_store %arg5[%c0_3, %c18], %2 {strides = array<i32>} : memref<8x307xf32, #tpu.memory_space<vmem>>, vector<8x16xf32>,
    %c0_4 = arith.constant 0 : index
    %c16 = arith.constant 16 : index
    %4 = vector.load %arg0[%c0_4, %c16] : memref<8x256xf32, #tpu.memory_space<vmem>>, vector<8x16xf32>
    %c0_5 = arith.constant 0 : index
    %c35 = arith.constant 35 : index
    %5 = vector.load %arg5[%c0_5, %c35] : memref<8x307xf32, #tpu.memory_space<vmem>>, vector<8x16xf32>
    tpu.vector_store %arg5[%c0_5, %c35], %4 {strides = array<i32>} : memref<8x307xf32, #tpu.memory_space<vmem>>, vector<8x16xf32>,
    %c0_6 = arith.constant 0 : index
    %c32 = arith.constant 32 : index
    %6 = vector.load %arg0[%c0_6, %c32] : memref<8x256xf32, #tpu.memory_space<vmem>>, vector<8x16xf32>
    %c0_7 = arith.constant 0 : index
    %c52 = arith.constant 52 : index
    %7 = vector.load %arg5[%c0_7, %c52] : memref<8x307xf32, #tpu.memory_space<vmem>>, vector<8x16xf32>
    tpu.vector_store %arg5[%c0_7, %c52], %6 {strides = array<i32>} : memref<8x307xf32, #tpu.memory_space<vmem>>, vector<8x16xf32>,
    %c0_8 = arith.constant 0 : index
    %c48 = arith.constant 48 : index
    %8 = vector.load %arg0[%c0_8, %c48] : memref<8x256xf32, #tpu.memory_space<vmem>>, vector<8x16xf32>
    %c0_9 = arith.constant 0 : index
    %c69 = arith.constant 69 : index
    %9 = vector.load %arg5[%c0_9, %c69] : memref<8x307xf32, #tpu.memory_space<vmem>>, vector<8x16xf32>
    tpu.vector_store %arg5[%c0_9, %c69], %8 {strides = array<i32>} : memref<8x307xf32, #tpu.memory_space<vmem>>, vector<8x16xf32>,
    %c0_10 = arith.constant 0 : index
    %c64 = arith.constant 64 : index
    %10 = vector.load %arg0[%c0_10, %c64] : memref<8x256xf32, #tpu.memory_space<vmem>>, vector<8x16xf32>
    %c0_11 = arith.constant 0 : index
    %c86 = arith.constant 86 : index
    %11 = vector.load %arg5[%c0_11, %c86] : memref<8x307xf32, #tpu.memory_space<vmem>>, vector<8x16xf32>
    tpu.vector_store %arg5[%c0_11, %c86], %10 {strides = array<i32>} : memref<8x307xf32, #tpu.memory_space<vmem>>, vector<8x16xf32>,
    %c0_12 = arith.constant 0 : index
    %c80 = arith.constant 80 : index
    %12 = vector.load %arg0[%c0_12, %c80] : memref<8x256xf32, #tpu.memory_space<vmem>>, vector<8x16xf32>
    %c0_13 = arith.constant 0 : index
    %c103 = arith.constant 103 : index
    %13 = vector.load %arg5[%c0_13, %c103] : memref<8x307xf32, #tpu.memory_space<vmem>>, vector<8x16xf32>
    tpu.vector_store %arg5[%c0_13, %c103], %12 {strides = array<i32>} : memref<8x307xf32, #tpu.memory_space<vmem>>, vector<8x16xf32>,
    %c0_14 = arith.constant 0 : index
    %c96 = arith.constant 96 : index
    %14 = vector.load %arg0[%c0_14, %c96] : memref<8x256xf32, #tpu.memory_space<vmem>>, vector<8x16xf32>
    %c0_15 = arith.constant 0 : index
    %c120 = arith.constant 120 : index
    %15 = vector.load %arg5[%c0_15, %c120] : memref<8x307xf32, #tpu.memory_space<vmem>>, vector<8x16xf32>
    tpu.vector_store %arg5[%c0_15, %c120], %14 {strides = array<i32>} : memref<8x307xf32, #tpu.memory_space<vmem>>, vector<8x16xf32>,
    %c0_16 = arith.constant 0 : index
    %c112 = arith.constant 112 : index
    %16 = vector.load %arg0[%c0_16, %c112] : memref<8x256xf32, #tpu.memory_space<vmem>>, vector<8x16xf32>
    %c0_17 = arith.constant 0 : index
    %c137 = arith.constant 137 : index
    %17 = vector.load %arg5[%c0_17, %c137] : memref<8x307xf32, #tpu.memory_space<vmem>>, vector<8x16xf32>
    tpu.vector_store %arg5[%c0_17, %c137], %16 {strides = array<i32>} : memref<8x307xf32, #tpu.memory_space<vmem>>, vector<8x16xf32>,
    %c0_18 = arith.constant 0 : index
    %c128 = arith.constant 128 : index
    %18 = vector.load %arg0[%c0_18, %c128] : memref<8x256xf32, #tpu.memory_space<vmem>>, vector<8x16xf32>
    %c0_19 = arith.constant 0 : index
    %c154 = arith.constant 154 : index
    %19 = vector.load %arg5[%c0_19, %c154] : memref<8x307xf32, #tpu.memory_space<vmem>>, vector<8x16xf32>
    tpu.vector_store %arg5[%c0_19, %c154], %18 {strides = array<i32>} : memref<8x307xf32, #tpu.memory_space<vmem>>, vector<8x16xf32>,
    %c0_20 = arith.constant 0 : index
    %c144 = arith.constant 144 : index
    %20 = vector.load %arg0[%c0_20, %c144] : memref<8x256xf32, #tpu.memory_space<vmem>>, vector<8x16xf32>
    %c0_21 = arith.constant 0 : index
    %c171 = arith.constant 171 : index
    %21 = vector.load %arg5[%c0_21, %c171] : memref<8x307xf32, #tpu.memory_space<vmem>>, vector<8x16xf32>
    tpu.vector_store %arg5[%c0_21, %c171], %20 {strides = array<i32>} : memref<8x307xf32, #tpu.memory_space<vmem>>, vector<8x16xf32>,
    %c0_22 = arith.constant 0 : index
    %c160 = arith.constant 160 : index
    %22 = vector.load %arg0[%c0_22, %c160] : memref<8x256xf32, #tpu.memory_space<vmem>>, vector<8x16xf32>
    %c0_23 = arith.constant 0 : index
    %c188 = arith.constant 188 : index
    %23 = vector.load %arg5[%c0_23, %c188] : memref<8x307xf32, #tpu.memory_space<vmem>>, vector<8x16xf32>
    tpu.vector_store %arg5[%c0_23, %c188], %22 {strides = array<i32>} : memref<8x307xf32, #tpu.memory_space<vmem>>, vector<8x16xf32>,
    %c0_24 = arith.constant 0 : index
    %c176 = arith.constant 176 : index
    %24 = vector.load %arg0[%c0_24, %c176] : memref<8x256xf32, #tpu.memory_space<vmem>>, vector<8x16xf32>
    %c0_25 = arith.constant 0 : index
    %c205 = arith.constant 205 : index
    %25 = vector.load %arg5[%c0_25, %c205] : memref<8x307xf32, #tpu.memory_space<vmem>>, vector<8x16xf32>
    tpu.vector_store %arg5[%c0_25, %c205], %24 {strides = array<i32>} : memref<8x307xf32, #tpu.memory_space<vmem>>, vector<8x16xf32>,
    %c0_26 = arith.constant 0 : index
    %c192 = arith.constant 192 : index
    %26 = vector.load %arg0[%c0_26, %c192] : memref<8x256xf32, #tpu.memory_space<vmem>>, vector<8x16xf32>
    %c0_27 = arith.constant 0 : index
    %c222 = arith.constant 222 : index
    %27 = vector.load %arg5[%c0_27, %c222] : memref<8x307xf32, #tpu.memory_space<vmem>>, vector<8x16xf32>
    tpu.vector_store %arg5[%c0_27, %c222], %26 {strides = array<i32>} : memref<8x307xf32, #tpu.memory_space<vmem>>, vector<8x16xf32>,
    %c0_28 = arith.constant 0 : index
    %c208 = arith.constant 208 : index
    %28 = vector.load %arg0[%c0_28, %c208] : memref<8x256xf32, #tpu.memory_space<vmem>>, vector<8x16xf32>
    %c0_29 = arith.constant 0 : index
    %c239 = arith.constant 239 : index
    %29 = vector.load %arg5[%c0_29, %c239] : memref<8x307xf32, #tpu.memory_space<vmem>>, vector<8x16xf32>
    tpu.vector_store %arg5[%c0_29, %c239], %28 {strides = array<i32>} : memref<8x307xf32, #tpu.memory_space<vmem>>, vector<8x16xf32>,
    %c0_30 = arith.constant 0 : index
    %c224 = arith.constant 224 : index
    %30 = vector.load %arg0[%c0_30, %c224] : memref<8x256xf32, #tpu.memory_space<vmem>>, vector<8x16xf32>
    %c0_31 = arith.constant 0 : index
    %c256 = arith.constant 256 : index
    %31 = vector.load %arg5[%c0_31, %c256] : memref<8x307xf32, #tpu.memory_space<vmem>>, vector<8x16xf32>
    tpu.vector_store %arg5[%c0_31, %c256], %30 {strides = array<i32>} : memref<8x307xf32, #tpu.memory_space<vmem>>, vector<8x16xf32>,
    %c0_32 = arith.constant 0 : index
    %c240 = arith.constant 240 : index
    %32 = vector.load %arg0[%c0_32, %c240] : memref<8x256xf32, #tpu.memory_space<vmem>>, vector<8x16xf32>
    %c0_33 = arith.constant 0 : index
    %c273 = arith.constant 273 : index
    %33 = vector.load %arg5[%c0_33, %c273] : memref<8x307xf32, #tpu.memory_space<vmem>>, vector<8x16xf32>
    tpu.vector_store %arg5[%c0_33, %c273], %32 {strides = array<i32>} : memref<8x307xf32, #tpu.memory_space<vmem>>, vector<8x16xf32>,
    %c0_34 = arith.constant 0 : index
    %c0_35 = arith.constant 0 : index
    %34 = vector.load %arg5[%c0_34, %c0_35] : memref<8x307xf32, #tpu.memory_space<vmem>>, vector<8x289xf32>
    %c0_36 = arith.constant 0 : index
    %c0_37 = arith.constant 0 : index
    %35 = vector.load %arg6[%c0_36, %c0_37] : memref<32x289xf32, #tpu.memory_space<vmem>>, vector<8x289xf32>
    tpu.vector_store %arg6[%c0_36, %c0_37], %34 {strides = array<i32>} : memref<32x289xf32, #tpu.memory_space<vmem>>, vector<8x289xf32>,
    %c0_38 = arith.constant 0 : index
    %c1 = arith.constant 1 : index
    %36 = vector.load %arg5[%c0_38, %c1] : memref<8x307xf32, #tpu.memory_space<vmem>>, vector<8x289xf32>
    %c8 = arith.constant 8 : index
    %c0_39 = arith.constant 0 : index
    %37 = vector.load %arg6[%c8, %c0_39] : memref<32x289xf32, #tpu.memory_space<vmem>>, vector<8x289xf32>
    tpu.vector_store %arg6[%c8, %c0_39], %36 {strides = array<i32>} : memref<32x289xf32, #tpu.memory_space<vmem>>, vector<8x289xf32>,
    %c0_40 = arith.constant 0 : index
    %c17 = arith.constant 17 : index
    %38 = vector.load %arg5[%c0_40, %c17] : memref<8x307xf32, #tpu.memory_space<vmem>>, vector<8x289xf32>
    %c16_41 = arith.constant 16 : index
    %c0_42 = arith.constant 0 : index
    %39 = vector.load %arg6[%c16_41, %c0_42] : memref<32x289xf32, #tpu.memory_space<vmem>>, vector<8x289xf32>
    tpu.vector_store %arg6[%c16_41, %c0_42], %38 {strides = array<i32>} : memref<32x289xf32, #tpu.memory_space<vmem>>, vector<8x289xf32>,
    %c0_43 = arith.constant 0 : index
    %c18_44 = arith.constant 18 : index
    %40 = vector.load %arg5[%c0_43, %c18_44] : memref<8x307xf32, #tpu.memory_space<vmem>>, vector<8x289xf32>
    %c24 = arith.constant 24 : index
    %c0_45 = arith.constant 0 : index
    %41 = vector.load %arg6[%c24, %c0_45] : memref<32x289xf32, #tpu.memory_space<vmem>>, vector<8x289xf32>
    tpu.vector_store %arg6[%c24, %c0_45], %40 {strides = array<i32>} : memref<32x289xf32, #tpu.memory_space<vmem>>, vector<8x289xf32>,
    %c0_46 = arith.constant 0 : index
    %c0_47 = arith.constant 0 : index
    %42 = vector.load %arg1[%c0_46, %c0_47] : memref<16x32xf32, #tpu.memory_space<vmem>>, vector<16x32xf32>
    %c0_48 = arith.constant 0 : index
    %c0_49 = arith.constant 0 : index
    %43 = vector.load %arg6[%c0_48, %c0_49] : memref<32x289xf32, #tpu.memory_space<vmem>>, vector<32x289xf32>
    %cst_50 = arith.constant dense<0.000000e+00> : vector<16x289xf32>
    %44 = tpu.matmul %42, %43, %cst_50 {dimension_numbers = #tpu.dot_dimension_numbers<[1], [0], [0], [1], [0, 0, 1, 1], [], []>} : vector<16x32xf32>, vector<32x289xf32>, vector<16x289xf32> -> vector<16x289xf32>
    %c0_51 = arith.constant 0 : index
    %c0_52 = arith.constant 0 : index
    %45 = vector.load %arg2[%c0_51, %c0_52] : memref<16x1xf32, #tpu.memory_space<vmem>>, vector<16x1xf32>
    %46 = vector.broadcast %45 : vector<16x1xf32> to vector<16x289xf32>
    %47 = arith.addf %44, %46 : vector<16x289xf32>
    %c0_53 = arith.constant 0 : index
    %c0_54 = arith.constant 0 : index
    %48 = vector.load %arg3[%c0_53, %c0_54] : memref<16x289xf32, #tpu.memory_space<vmem>>, vector<16x289xf32>
    %49 = arith.addf %47, %48 : vector<16x289xf32>
    %c0_55 = arith.constant 0 : index
    %c0_56 = arith.constant 0 : index
    %50 = vector.load %arg4[%c0_55, %c0_56] : memref<16x289xf32, #tpu.memory_space<vmem>>, vector<16x289xf32>
    tpu.vector_store %arg4[%c0_55, %c0_56], %49 {strides = array<i32>} : memref<16x289xf32, #tpu.memory_space<vmem>>, vector<16x289xf32>,
    return
  }
}

</mosaic_0001>

<llo_original>
// kernel: _forward.1
$region0: #{_forward.1}
  #allocation0 [shape = 'u32[]', space=smem, size = 0x4, offset = 0x4, fixed_abs, tag = 'smem constant byte address 0x4 - core index']
  #allocation1 [shape = 'u32[144,128]{1,0:T(1,128)}', space=vmem, size = 0x12000, scoped, tag = 'internal scratch']
  #allocation2 [shape = 'f32[8,307]{1,0:T(8,128)}', space=vmem, size = 0x3000, scoped, tag = 'scratch operand']
  #allocation3 [shape = 'f32[32,289]{1,0:T(8,128)}', space=vmem, size = 0xc000, scoped, tag = 'scratch operand']
  %s0 = inlined_call_operand.vmem [shape: f32[8,256], index: 0, kind: input, shape index: {}]
  %s1 = inlined_call_operand.vmem [shape: f32[16,32], index: 1, kind: input, shape index: {}]
  %s2 = inlined_call_operand.vmem [shape: f32[16,1], index: 2, kind: input, shape index: {}]
  %s3 = inlined_call_operand.vmem [shape: f32[16,289], index: 3, kind: input, shape index: {}, may-alias: {3,4}]
  %s4 = inlined_call_operand.vmem [shape: f32[16,289], index: 4, kind: output, shape index: {}, may-alias: {3,4}]
  %s5 = sld [smem:[#allocation0]]
  $region26: #{_forward.1} parent=0
    _
  %s7 = ssub.s32 1, %s5
  %s8 = scalar_select 0, %s7, %s5
  // Predicated region
  $region2: #{_forward.1} parent=0 // pred_check
    _
  $region3: #{_forward.1} parent=0 // pred_check_branch
    %10 = sbr.rel (0) target = $region5
  $region4: #{_forward.1} parent=0 // pred_region
    _
  $region5: #{_forward.1} parent=0 // pred_fallthru
    _
  // Predicated region
  $region6: #{_forward.1} parent=0 // pred_check
    _
  $region7: #{_forward.1} parent=0 // pred_check_branch
    %12 = sbr.rel (0) target = $region9
  $region8: #{_forward.1} parent=0 // pred_region
    _
  $region9: #{_forward.1} parent=0 // pred_fallthru
    _
  // Predicated region
  $region10: #{_forward.1} parent=0 // pred_check
    _
  $region11: #{_forward.1} parent=0 // pred_check_branch
    %14 = sbr.rel (0) target = $region13
  $region12: #{_forward.1} parent=0 // pred_region
    _
  $region13: #{_forward.1} parent=0 // pred_fallthru
    _
  // Predicated region
  $region14: #{_forward.1} parent=0 // pred_check
    _
  $region15: #{_forward.1} parent=0 // pred_check_branch
    %16 = sbr.rel (0) target = $region17
  $region16: #{_forward.1} parent=0 // pred_region
    _
  $region17: #{_forward.1} parent=0 // pred_fallthru
    _
  %17 = vst [vmem:[#allocation2] sm:$0xff] 0.0
  %18 = vst [vmem:[#allocation2 + $0x8] sm:$0xff] 0.0
  %vm19 = vcmask 416768
  %20 = vst.msk [vmem:[#allocation2 + $0x10] sm:$0xff] %vm19, 0.0
  %v21 = vld [vmem:[%s0] sm:$0xff]
  %23 = vrot.lane.b32.xlu0 %v21, 18
  %v24 = vpop.permute.xlu0 %23
  %vm26 = vcmask 277648
  %27 = vst.msk [vmem:[#allocation2] sm:$0xff] %vm26, %v24
  %v28 = vld [vmem:[%s0] sm:$0xff]
  %30 = vrot.lane.b32.xlu0 %v28, 19
  %v31 = vpop.permute.xlu0 %30
  %vm33 = vcmask 417048
  %34 = vst.msk [vmem:[#allocation2] sm:$0xff] %vm33, %v31
  %v35 = vld [vmem:[%s0] sm:$0xff]
  %37 = vrot.lane.b32.xlu0 %v35, 20
  %v38 = vpop.permute.xlu0 %37
  %vm40 = vcmask 556448
  %41 = vst.msk [vmem:[#allocation2] sm:$0xff] %vm40, %v38
  %v42 = vld [vmem:[%s0] sm:$0xff]
  %44 = vrot.lane.b32.xlu0 %v42, 21
  %v45 = vpop.permute.xlu0 %44
  %vm47 = vcmask 695848
  %48 = vst.msk [vmem:[#allocation2] sm:$0xff] %vm47, %v45
  %v49 = vld [vmem:[%s0] sm:$0xff]
  %51 = vrot.lane.b32.xlu0 %v49, 22
  %v52 = vpop.permute.xlu0 %51
  %vm54 = vcmask 835248
  %55 = vst.msk [vmem:[#allocation2] sm:$0xff] %vm54, %v52
  %v56 = vld [vmem:[%s0] sm:$0xff]
  %58 = vrot.lane.b32.xlu0 %v56, 23
  %v59 = vpop.permute.xlu0 %58
  %vm61 = vcmask 974648
  %62 = vst.msk [vmem:[#allocation2] sm:$0xff] %vm61, %v59
  %v63 = vld [vmem:[%s0] sm:$0xff]
  %65 = vrot.lane.b32.xlu0 %v63, 24
  %v66 = vpop.permute.xlu0 %65
  %vm68 = vcmask 1048512
  %69 = vst.msk [vmem:[#allocation2] sm:$0xff] %vm68, %v66
  %vm70 = vcmask 64512
  %71 = vst.msk [vmem:[#allocation2 + $0x8] sm:$0xff] %vm70, %v66
  %v72 = vld [vmem:[%s0] sm:$0xff]
  %74 = vrot.lane.b32.xlu0 %v72, 25
  %v75 = vpop.permute.xlu0 %74
  %vm77 = vcmask 203848
  %78 = vst.msk [vmem:[#allocation2 + $0x8] sm:$0xff] %vm77, %v75
  %v79 = vld [vmem:[%s0 + $0x8] sm:$0xff]
  %81 = vrot.lane.b32.xlu0 %v79, 26
  %v82 = vpop.permute.xlu0 %81
  %vm84 = vcmask 343248
  %85 = vst.msk [vmem:[#allocation2 + $0x8] sm:$0xff] %vm84, %v82
  %v86 = vld [vmem:[%s0 + $0x8] sm:$0xff]
  %88 = vrot.lane.b32.xlu0 %v86, 27
  %v89 = vpop.permute.xlu0 %88
  %vm91 = vcmask 482648
  %92 = vst.msk [vmem:[#allocation2 + $0x8] sm:$0xff] %vm91, %v89
  %v93 = vld [vmem:[%s0 + $0x8] sm:$0xff]
  %95 = vrot.lane.b32.xlu0 %v93, 28
  %v96 = vpop.permute.xlu0 %95
  %vm98 = vcmask 622048
  %99 = vst.msk [vmem:[#allocation2 + $0x8] sm:$0xff] %vm98, %v96
  %v100 = vld [vmem:[%s0 + $0x8] sm:$0xff]
  %102 = vrot.lane.b32.xlu0 %v100, 29
  %v103 = vpop.permute.xlu0 %102
  %vm105 = vcmask 761448
  %106 = vst.msk [vmem:[#allocation2 + $0x8] sm:$0xff] %vm105, %v103
  %v107 = vld [vmem:[%s0 + $0x8] sm:$0xff]
  %109 = vrot.lane.b32.xlu0 %v107, 30
  %v110 = vpop.permute.xlu0 %109
  %vm112 = vcmask 900848
  %113 = vst.msk [vmem:[#allocation2 + $0x8] sm:$0xff] %vm112, %v110
  %v114 = vld [vmem:[%s0 + $0x8] sm:$0xff]
  %116 = vrot.lane.b32.xlu0 %v114, 31
  %v117 = vpop.permute.xlu0 %116
  %vm119 = vcmask 1040248
  %120 = vst.msk [vmem:[#allocation2 + $0x8] sm:$0xff] %vm119, %v117
  %v121 = vld [vmem:[%s0 + $0x8] sm:$0xff]
  %123 = vrot.lane.b32.xlu0 %v121, 32
  %v124 = vpop.permute.xlu0 %123
  %vm126 = vcmask 130048
  %127 = vst.msk [vmem:[#allocation2 + $0x10] sm:$0xff] %vm126, %v124
  %v128 = vld [vmem:[%s0 + $0x8] sm:$0xff]
  %130 = vrot.lane.b32.xlu0 %v128, 33
  %v131 = vpop.permute.xlu0 %130
  %vm133 = vcmask 269448
  %134 = vst.msk [vmem:[#allocation2 + $0x10] sm:$0xff] %vm133, %v131
  %v135 = vld [vmem:[#allocation2] sm:$0xff]
  %v136 = vld [vmem:[#allocation2 + $0x8] sm:$0xff]
  %v137 = vld [vmem:[#allocation2 + $0x10] sm:$0xff]
  %138 = vst [vmem:[#allocation3] sm:$0xff] %v135
  %139 = vst [vmem:[#allocation3 + $0x8] sm:$0xff] %v136
  %vm140 = vcmask 269312
  %141 = vst.msk [vmem:[#allocation3 + $0x10] sm:$0xff] %vm140, %v137
  %v142 = vld [vmem:[#allocation2] sm:$0xff]
  %v143 = vld [vmem:[#allocation2 + $0x8] sm:$0xff]
  %v144 = vld [vmem:[#allocation2 + $0x10] sm:$0xff]
  %148 = vrot.lane.b32.xlu0 %v142, 127
  %v149 = vpop.permute.xlu0 %148
  %150 = vrot.lane.b32.xlu0 %v143, 127
  %v151 = vpop.permute.xlu0 %150
  %152 = vrot.lane.b32.xlu0 %v144, 127
  %v153 = vpop.permute.xlu0 %152
  %vm154 = vcmask 1039360
  %v155 = vsel %vm154, %v149, %v151
  %v156 = vsel %vm154, %v151, %v153
  %160 = vst [vmem:[#allocation3 + $0x18] sm:$0xff] %v155
  %161 = vst [vmem:[#allocation3 + $0x20] sm:$0xff] %v156
  %162 = vst.msk [vmem:[#allocation3 + $0x28] sm:$0xff] %vm140, %v153
  %v163 = vld [vmem:[#allocation2] sm:$0xff]
  %v164 = vld [vmem:[#allocation2 + $0x8] sm:$0xff]
  %v165 = vld [vmem:[#allocation2 + $0x10] sm:$0xff]
  %169 = vrot.lane.b32.xlu0 %v163, 111
  %v170 = vpop.permute.xlu0 %169
  %171 = vrot.lane.b32.xlu0 %v164, 111
  %v172 = vpop.permute.xlu0 %171
  %173 = vrot.lane.b32.xlu0 %v165, 111
  %v174 = vpop.permute.xlu0 %173
  %vm175 = vcmask 908288
  %v176 = vsel %vm175, %v170, %v172
  %v177 = vsel %vm175, %v172, %v174
  %181 = vst [vmem:[#allocation3 + $0x30] sm:$0xff] %v176
  %182 = vst [vmem:[#allocation3 + $0x38] sm:$0xff] %v177
  %183 = vst.msk [vmem:[#allocation3 + $0x40] sm:$0xff] %vm140, %v174
  %v184 = vld [vmem:[#allocation2] sm:$0xff]
  %v185 = vld [vmem:[#allocation2 + $0x8] sm:$0xff]
  %v186 = vld [vmem:[#allocation2 + $0x10] sm:$0xff]
  %190 = vrot.lane.b32.xlu0 %v184, 110
  %v191 = vpop.permute.xlu0 %190
  %192 = vrot.lane.b32.xlu0 %v185, 110
  %v193 = vpop.permute.xlu0 %192
  %194 = vrot.lane.b32.xlu0 %v186, 110
  %v195 = vpop.permute.xlu0 %194
  %vm196 = vcmask 900096
  %v197 = vsel %vm196, %v191, %v193
  %v198 = vsel %vm196, %v193, %v195
  %202 = vst [vmem:[#allocation3 + $0x48] sm:$0xff] %v197
  %203 = vst [vmem:[#allocation3 + $0x50] sm:$0xff] %v198
  %204 = vst.msk [vmem:[#allocation3 + $0x58] sm:$0xff] %vm140, %v195
  %v205 = vld [vmem:[%s1] sm:$0xff]
  %v206 = vld [vmem:[%s1 + $0x8] sm:$0xff]
  %v207 = vld [vmem:[#allocation3] sm:$0xff]
  %v208 = vld [vmem:[#allocation3 + $0x8] sm:$0xff]
  %v209 = vld [vmem:[#allocation3 + $0x10] sm:$0xff]
  %v210 = vld [vmem:[#allocation3 + $0x18] sm:$0xff]
  %v211 = vld [vmem:[#allocation3 + $0x20] sm:$0xff]
  %v212 = vld [vmem:[#allocation3 + $0x28] sm:$0xff]
  %v213 = vld [vmem:[#allocation3 + $0x30] sm:$0xff]
  %v214 = vld [vmem:[#allocation3 + $0x38] sm:$0xff]
  %v215 = vld [vmem:[#allocation3 + $0x40] sm:$0xff]
  %v216 = vld [vmem:[#allocation3 + $0x48] sm:$0xff]
  %v217 = vld [vmem:[#allocation3 + $0x50] sm:$0xff]
  %v218 = vld [vmem:[#allocation3 + $0x58] sm:$0xff]
  %v219 = vld [vmem:[%s2] sm:$0xff]
  %v220 = vld [vmem:[%s2 + $0x8] sm:$0xff]
  %222 = vset.pattern.permute.xlu0 0
  %223 = vperm.xlu0 %222, %v219
  %v224 = vpop.permute.xlu0 %223
  %227 = vset.pattern.permute.xlu0 0
  %228 = vperm.xlu0 %227, %v220
  %v229 = vpop.permute.xlu0 %228
  %vm231 = vcmask 261120
  %v233 = vsel %vm231, %v205, 0
  %v236 = vsel %vm231, %v206, 0
  %238 = vmatprep.subr.mxu0 %v208
  %239 = vmatpush1.msra.mxu0 %v207
  %240 = vmatprep.subr.mxu0 %v211
  %241 = vmatpush1.msra.mxu0 %v210
  %242 = vmatprep.subr.mxu0 %v214
  %243 = vmatpush1.msra.mxu0 %v213
  %244 = vmatprep.subr.mxu0 %v217
  %245 = vmatpush1.msra.mxu0 %v216
  %246 = vmatprep.subr.mxu0 0.0
  %247 = vmatpush1.msra.mxu0 0.0
  %248 = vmatprep.subr.mxu0 0.0
  %249 = vmatpush1.msra.mxu0 0.0
  %250 = vmatprep.subr.mxu0 0.0
  %251 = vmatpush1.msra.mxu0 0.0
  %252 = vmatprep.subr.mxu0 0.0
  %253 = vmatpush1.msra.mxu0 0.0
  %254 = vmatprep.subr.mxu0 0.0
  %255 = vmatpush1.msra.mxu0 0.0
  %256 = vmatprep.subr.mxu0 0.0
  %257 = vmatpush1.msra.mxu0 0.0
  %258 = vmatprep.subr.mxu0 0.0
  %259 = vmatpush1.msra.mxu0 0.0
  %260 = vmatprep.subr.mxu0 0.0
  %261 = vmatpush1.msra.mxu0 0.0
  %262 = vmatprep.subr.mxu0 0.0
  %263 = vmatpush1.msra.mxu0 0.0
  %264 = vmatprep.subr.mxu0 0.0
  %265 = vmatpush1.msra.mxu0 0.0
  %266 = vmatprep.subr.mxu0 0.0
  %267 = vmatpush1.msra.mxu0 0.0
  %268 = vmatprep.subr.mxu0 0.0
  %269 = vmatpush1.msra.mxu0 0.0
  %270 = vmatprep.subr.mxu0 0.0
  %271 = vmatpush1.msra.mxu0 0.0
  %272 = vmatprep.subr.mxu0 0.0
  %273 = vmatpush1.msra.mxu0 0.0
  %274 = vmatprep.subr.mxu0 0.0
  %275 = vmatpush1.msra.mxu0 0.0
  %276 = vmatprep.subr.mxu0 0.0
  %277 = vmatpush1.msra.mxu0 0.0
  %278 = vmatprep.subr.mxu0 0.0
  %279 = vmatpush1.msra.mxu0 0.0
  %280 = vmatprep.subr.mxu0 0.0
  %281 = vmatpush1.msra.mxu0 0.0
  %282 = vmatprep.subr.mxu0 0.0
  %283 = vmatpush1.msra.mxu0 0.0
  %284 = vmatprep.subr.mxu0 0.0
  %285 = vmatpush1.msra.mxu0 0.0
  %286 = vmatprep.subr.mxu0 0.0
  %287 = vmatpush1.msra.mxu0 0.0
  %288 = vmatprep.subr.mxu0 0.0
  %289 = vmatpush1.msra.mxu0 0.0
  %290 = vmatprep.subr.mxu0 0.0
  %291 = vmatpush1.msra.mxu0 0.0
  %292 = vmatprep.subr.mxu0 0.0
  %293 = vmatpush1.msra.mxu0 0.0
  %294 = vmatprep.subr.mxu0 0.0
  %295 = vmatpush1.msra.mxu0 0.0
  %296 = vmatprep.subr.mxu0 0.0
  %297 = vmatpush1.msra.mxu0 0.0
  %298 = vmatprep.subr.mxu0 0.0
  %299 = vmatpush1.msra.mxu0 0.0
  %300 = vmatprep.subr.mxu0 0.0
  %301 = vmatpush1.msra.mxu0 0.0
  %302 = vmatprep.mubr.f32.mxu0 0.0
  %303 = vmatmul.mubr.f32.gmra.mrb[0].mxu0 %v233
  %v304 = vpop.f32.mrb[0].mxu0
  %v305 = vadd.f32 %v224, %v304
  %v306 = vpop.f32.mrb[0].mxu0
  %v307 = vadd.f32 %v224, %v306
  %308 = vmatprep.mubr.f32.mxu0 0.0
  %309 = vmatmul.mubr.f32.gmra.mrb[0].mxu0 %v236
  %v310 = vpop.f32.mrb[0].mxu0
  %v311 = vadd.f32 %v229, %v310
  %v312 = vpop.f32.mrb[0].mxu0
  %v313 = vadd.f32 %v229, %v312
  %314 = vdwg.mxu0
  %315 = vmatprep.subr.mxu0 0.0
  %316 = vmatpush1.msra.mxu0 %v209
  %317 = vmatprep.subr.mxu0 0.0
  %318 = vmatpush1.msra.mxu0 %v212
  %319 = vmatprep.subr.mxu0 0.0
  %320 = vmatpush1.msra.mxu0 %v215
  %321 = vmatprep.subr.mxu0 0.0
  %322 = vmatpush1.msra.mxu0 %v218
  %323 = vmatprep.subr.mxu0 0.0
  %324 = vmatpush1.msra.mxu0 0.0
  %325 = vmatprep.subr.mxu0 0.0
  %326 = vmatpush1.msra.mxu0 0.0
  %327 = vmatprep.subr.mxu0 0.0
  %328 = vmatpush1.msra.mxu0 0.0
  %329 = vmatprep.subr.mxu0 0.0
  %330 = vmatpush1.msra.mxu0 0.0
  %331 = vmatprep.subr.mxu0 0.0
  %332 = vmatpush1.msra.mxu0 0.0
  %333 = vmatprep.subr.mxu0 0.0
  %334 = vmatpush1.msra.mxu0 0.0
  %335 = vmatprep.subr.mxu0 0.0
  %336 = vmatpush1.msra.mxu0 0.0
  %337 = vmatprep.subr.mxu0 0.0
  %338 = vmatpush1.msra.mxu0 0.0
  %339 = vmatprep.subr.mxu0 0.0
  %340 = vmatpush1.msra.mxu0 0.0
  %341 = vmatprep.subr.mxu0 0.0
  %342 = vmatpush1.msra.mxu0 0.0
  %343 = vmatprep.subr.mxu0 0.0
  %344 = vmatpush1.msra.mxu0 0.0
  %345 = vmatprep.subr.mxu0 0.0
  %346 = vmatpush1.msra.mxu0 0.0
  %347 = vmatprep.subr.mxu0 0.0
  %348 = vmatpush1.msra.mxu0 0.0
  %349 = vmatprep.subr.mxu0 0.0
  %350 = vmatpush1.msra.mxu0 0.0
  %351 = vmatprep.subr.mxu0 0.0
  %352 = vmatpush1.msra.mxu0 0.0
  %353 = vmatprep.subr.mxu0 0.0
  %354 = vmatpush1.msra.mxu0 0.0
  %355 = vmatprep.subr.mxu0 0.0
  %356 = vmatpush1.msra.mxu0 0.0
  %357 = vmatprep.subr.mxu0 0.0
  %358 = vmatpush1.msra.mxu0 0.0
  %359 = vmatprep.subr.mxu0 0.0
  %360 = vmatpush1.msra.mxu0 0.0
  %361 = vmatprep.subr.mxu0 0.0
  %362 = vmatpush1.msra.mxu0 0.0
  %363 = vmatprep.subr.mxu0 0.0
  %364 = vmatpush1.msra.mxu0 0.0
  %365 = vmatprep.subr.mxu0 0.0
  %366 = vmatpush1.msra.mxu0 0.0
  %367 = vmatprep.subr.mxu0 0.0
  %368 = vmatpush1.msra.mxu0 0.0
  %369 = vmatprep.subr.mxu0 0.0
  %370 = vmatpush1.msra.mxu0 0.0
  %371 = vmatprep.subr.mxu0 0.0
  %372 = vmatpush1.msra.mxu0 0.0
  %373 = vmatprep.subr.mxu0 0.0
  %374 = vmatpush1.msra.mxu0 0.0
  %375 = vmatprep.subr.mxu0 0.0
  %376 = vmatpush1.msra.mxu0 0.0
  %377 = vmatprep.subr.mxu0 0.0
  %378 = vmatpush1.msra.mxu0 0.0
  %379 = vmatprep.mubr.f32.mxu0 0.0
  %380 = vmatmul.mubr.f32.gmra.mrb[0].mxu0 %v233
  %v381 = vpop.f32.mrb[0].mxu0
  %v382 = vadd.f32 %v224, %v381
  %v383 = vpop.f32.mrb[0].mxu0
  %384 = vmatprep.mubr.f32.mxu0 0.0
  %385 = vmatmul.mubr.f32.gmra.mrb[0].mxu0 %v236
  %v386 = vpop.f32.mrb[0].mxu0
  %v387 = vadd.f32 %v229, %v386
  %v388 = vpop.f32.mrb[0].mxu0
  %389 = vdwg.mxu0
  %v390 = vld [vmem:[%s3] sm:$0xff]
  %v391 = vld [vmem:[%s3 + $0x8] sm:$0xff]
  %v392 = vld [vmem:[%s3 + $0x10] sm:$0xff]
  %v393 = vld [vmem:[%s3 + $0x18] sm:$0xff]
  %v394 = vld [vmem:[%s3 + $0x20] sm:$0xff]
  %v395 = vld [vmem:[%s3 + $0x28] sm:$0xff]
  %v396 = vadd.f32 %v305, %v390
  %v397 = vadd.f32 %v307, %v391
  %v398 = vadd.f32 %v382, %v392
  %v399 = vadd.f32 %v311, %v393
  %v400 = vadd.f32 %v313, %v394
  %v401 = vadd.f32 %v387, %v395
  %402 = vst [vmem:[%s4] sm:$0xff] %v396
  %403 = vst [vmem:[%s4 + $0x8] sm:$0xff] %v397
  %404 = vst.msk [vmem:[%s4 + $0x10] sm:$0xff] %vm140, %v398
  %405 = vst [vmem:[%s4 + $0x18] sm:$0xff] %v399
  %406 = vst [vmem:[%s4 + $0x20] sm:$0xff] %v400
  %407 = vst.msk [vmem:[%s4 + $0x28] sm:$0xff] %vm140, %v401
  // Predicated region
  $region18: #{_forward.1} parent=0 // pred_check
    _
  $region19: #{_forward.1} parent=0 // pred_check_branch
    %409 = sbr.rel (0) target = $region21
  $region20: #{_forward.1} parent=0 // pred_region
    _
  $region21: #{_forward.1} parent=0 // pred_fallthru
    _
  // Predicated region
  $region22: #{_forward.1} parent=0 // pred_check
    _
  $region23: #{_forward.1} parent=0 // pred_check_branch
    %411 = sbr.rel (0) target = $region25
  $region24: #{_forward.1} parent=0 // pred_region
    _
  $region25: #{_forward.1} parent=0 // pred_fallthru
    _

</llo_original>
